<compile_context>
chip_gen: v7x
topology: tpu7x:2x2x1
jax: 0.10.0
libtpu: 0.0.40
codegen_flags: <defaults>
</compile_context>

<pallas_src>
import jax
import jax.numpy as jnp
from jax.experimental import pallas as pl
from jax.experimental.pallas import tpu as pltpu

_LANES = 512           # lane width of every tile (multiple of 128)
_MAX_BLOCK_ROWS = 512  # sublane rows per tile: 512x512 samples = 2 MiB/feature


def _cdiv(a, b):
    return -(-a // b)


def mlp_kernel(params_ref, x_ref, o_ref):
    """params_ref: SMEM (9,) f32 = [w1_00, w1_01, w1_10, w1_11,
                                    b1_0, b1_1, w2_00, w2_01, b2_0]
       x_ref:      VMEM (2, TR, C) -- x_ref[0]/x_ref[1] are dense per-feature slabs
       o_ref:      VMEM (TR, C)    -- sublane+lane-dense output slab
    """
    x0 = x_ref[0]                      # (TR, C) feature-0 slab
    x1 = x_ref[1]                      # (TR, C) feature-1 slab

    w1_00 = params_ref[0]
    w1_01 = params_ref[1]
    w1_10 = params_ref[2]
    w1_11 = params_ref[3]
    b1_0 = params_ref[4]
    b1_1 = params_ref[5]
    w2_00 = params_ref[6]
    w2_01 = params_ref[7]
    b2_0 = params_ref[8]

    # fc1 + ReLU on the VPU; hidden activations never leave vregs.
    h0 = jnp.maximum(x0 * w1_00 + x1 * w1_01 + b1_0, 0.0)
    h1 = jnp.maximum(x0 * w1_10 + x1 * w1_11 + b1_1, 0.0)
    # fc2
    o_ref[...] = (h0 * w2_00 + h1 * w2_01 + b2_0).astype(o_ref.dtype)


def simple_nn_forward(x, w1, b1, w2, b2):
    """Pallas equivalent of y = fc2(relu(fc1(x))) with torch-layout parameters.

    x: (B, 2), w1: (2, 2), b1: (2,), w2: (1, 2), b2: (1,). Returns (B, 1).
    """
    B, in_features = x.shape
    hidden = w1.shape[0]
    out_features = w2.shape[0]
    assert (in_features, hidden, out_features) == (2, 2, 1)

    # All 9 parameters, flattened, f32 -> one SMEM-resident scalar vector.
    params = jnp.concatenate(
        [w1.reshape(-1), b1.reshape(-1), w2.reshape(-1), b2.reshape(-1)]
    ).astype(jnp.float32)

    # Feature-major, dense view: (B, 2) -> (2, B) -> (2, Rtot, C).  Batch is
    # spread over (sublane, lane) so compute tiles are fully (8, 128) dense.
    xt = x.astype(jnp.float32).T                        # (2, B): one relayout pass
    if B < _LANES:
        lanes = B                                       # full-dim block, no padding
        bp = B
    else:
        lanes = _LANES
        bp = _cdiv(B, lanes) * lanes
        if bp != B:                                     # pad only the ragged tail row
            xt = jnp.pad(xt, ((0, 0), (0, bp - B)))
    rtot = bp // lanes

    if rtot <= 8:
        tr = rtot                                       # single full-dim block
    else:
        # >=2 grid steps (feeds both v7x TensorCores); rows a multiple of 8;
        # capped so one block stays ~2 MiB (double-buffered fits every
        # generation's scoped-VMEM default).
        tr = min(_MAX_BLOCK_ROWS, _cdiv(_cdiv(rtot, 2), 8) * 8)
    grid = (_cdiv(rtot, tr),)                           # overhang rows are masked

    x3 = xt.reshape(2, rtot, lanes)                     # free reshape (contiguous)

    out = pl.pallas_call(
        mlp_kernel,
        out_shape=jax.ShapeDtypeStruct((rtot, lanes), x.dtype),
        grid=grid,
        in_specs=[
            # 9 f32 scalars, SMEM-resident across all grid steps.
            pl.BlockSpec(memory_space=pltpu.MemorySpace.SMEM),
            # Activation tile: auto double-buffered HBM->VMEM pipeline over rows.
            pl.BlockSpec((2, tr, lanes), lambda i: (0, i, 0)),
        ],
        out_specs=pl.BlockSpec((tr, lanes), lambda i: (i, 0)),
        compiler_params=pltpu.CompilerParams(
            # Row tiles are independent -> v7x can split them across its 2 TCs.
            dimension_semantics=("parallel",),
        ),
        # Memory-bound streaming op: ~8 B in + 4 B out and ~14 flops per sample.
        cost_estimate=pl.CostEstimate(
            flops=14 * B, transcendentals=0, bytes_accessed=12 * B
        ),
    )(params, x3)

    y = out.reshape(-1)
    if bp != B:
        y = y[:B]
    return y.reshape(B, 1)                              # torch (B, 1) convention


def _reference(x, w1, b1, w2, b2):
    xf = x.astype(jnp.float32)
    return jnp.maximum(xf @ w1.T + b1, 0.0) @ w2.T + b2


if __name__ == "__main__":
    key = jax.random.PRNGKey(0)
    kx, k1, k2, k3, k4, kb1, kb2 = jax.random.split(key, 7)

    # torch.nn.Linear default init: U(-1/sqrt(fan_in), 1/sqrt(fan_in)), fan_in=2.
    bound = 1.0 / jnp.sqrt(2.0)
    w1 = jax.random.uniform(k1, (2, 2), jnp.float32, -bound, bound)  # fc1.weight (out, in)
    b1 = jax.random.uniform(k2, (2,), jnp.float32, -bound, bound)    # fc1.bias
    w2 = jax.random.uniform(k3, (1, 2), jnp.float32, -bound, bound)  # fc2.weight (out, in)
    b2 = jax.random.uniform(k4, (1,), jnp.float32, -bound, bound)    # fc2.bias

    # Small batch consistent with Linear(2, ...): single full-dim block path.
    x = jax.random.normal(kx, (8, 2), jnp.float32)
    out = jax.block_until_ready(simple_nn_forward(x, w1, b1, w2, b2))
    assert out.shape == (8, 1)
    assert jnp.allclose(out, _reference(x, w1, b1, w2, b2), atol=1e-5, rtol=1e-5)

    # Non-multiple batch: padded ragged-tail path.
    xb = jax.random.normal(kb1, (1000, 2), jnp.float32)
    outb = jax.block_until_ready(simple_nn_forward(xb, w1, b1, w2, b2))
    assert outb.shape == (1000, 1)
    assert jnp.allclose(outb, _reference(xb, w1, b1, w2, b2), atol=1e-5, rtol=1e-5)

    # Multi-step grid path (2 parallel blocks, last one row-overhanging):
    # exercises the dense-tile configuration used for large batches.
    xc = jax.random.normal(kb2, (6144, 2), jnp.float32)
    outc = jax.block_until_ready(simple_nn_forward(xc, w1, b1, w2, b2))
    assert outc.shape == (6144, 1)
    assert jnp.allclose(outc, _reference(xc, w1, b1, w2, b2), atol=1e-5, rtol=1e-5)

    print("KERNEL_OK")
</pallas_src>

<mosaic_0001>
module attributes {stable_mosaic.version = 11 : i64} {
  func.func @mlp_kernel(%arg0: i32, %arg1: memref<9xf32, #tpu.memory_space<smem>>, %arg2: memref<2x1x8xf32, #tpu.memory_space<vmem>>, %arg3: memref<1x8xf32, #tpu.memory_space<vmem>>) attributes {dimension_semantics = [#tpu.dimension_semantics<parallel>], iteration_bounds = array<i64: 1>, scalar_prefetch = 0 : i64, scratch_operands = 0 : i64, tpu.core_type = #tpu.core_type<tc>, window_params = [{transform_indices = @transform_0, window_bounds = array<i64: 9>}, {transform_indices = @transform_1, window_bounds = array<i64: 2, 1, 8>}, {transform_indices = @transform_2, window_bounds = array<i64: 1, 8>}]} {
    %c0 = arith.constant 0 : index
    %c0_0 = arith.constant 0 : index
    %c0_1 = arith.constant 0 : index
    %0 = vector.load %arg2[%c0, %c0_0, %c0_1] : memref<2x1x8xf32, #tpu.memory_space<vmem>>, vector<1x1x8xf32>
    %1 = vector.shape_cast %0 : vector<1x1x8xf32> to vector<1x8xf32>
    %c1 = arith.constant 1 : index
    %c0_2 = arith.constant 0 : index
    %c0_3 = arith.constant 0 : index
    %2 = vector.load %arg2[%c1, %c0_2, %c0_3] : memref<2x1x8xf32, #tpu.memory_space<vmem>>, vector<1x1x8xf32>
    %3 = vector.shape_cast %2 : vector<1x1x8xf32> to vector<1x8xf32>
    %c0_4 = arith.constant 0 : index
    %4 = memref.load %arg1[%c0_4] : memref<9xf32, #tpu.memory_space<smem>>
    %c1_5 = arith.constant 1 : index
    %5 = memref.load %arg1[%c1_5] : memref<9xf32, #tpu.memory_space<smem>>
    %c2 = arith.constant 2 : index
    %6 = memref.load %arg1[%c2] : memref<9xf32, #tpu.memory_space<smem>>
    %c3 = arith.constant 3 : index
    %7 = memref.load %arg1[%c3] : memref<9xf32, #tpu.memory_space<smem>>
    %c4 = arith.constant 4 : index
    %8 = memref.load %arg1[%c4] : memref<9xf32, #tpu.memory_space<smem>>
    %c5 = arith.constant 5 : index
    %9 = memref.load %arg1[%c5] : memref<9xf32, #tpu.memory_space<smem>>
    %c6 = arith.constant 6 : index
    %10 = memref.load %arg1[%c6] : memref<9xf32, #tpu.memory_space<smem>>
    %c7 = arith.constant 7 : index
    %11 = memref.load %arg1[%c7] : memref<9xf32, #tpu.memory_space<smem>>
    %c8 = arith.constant 8 : index
    %12 = memref.load %arg1[%c8] : memref<9xf32, #tpu.memory_space<smem>>
    %13 = vector.broadcast %4 : f32 to vector<1x8xf32>
    %14 = arith.mulf %1, %13 : vector<1x8xf32>
    %15 = vector.broadcast %5 : f32 to vector<1x8xf32>
    %16 = arith.mulf %3, %15 : vector<1x8xf32>
    %17 = arith.addf %14, %16 : vector<1x8xf32>
    %18 = vector.broadcast %8 : f32 to vector<1x8xf32>
    %19 = arith.addf %17, %18 : vector<1x8xf32>
    %cst = arith.constant 0.000000e+00 : f32
    %20 = vector.broadcast %cst : f32 to vector<1x8xf32>
    %21 = arith.maximumf %19, %20 : vector<1x8xf32>
    %22 = vector.broadcast %6 : f32 to vector<1x8xf32>
    %23 = arith.mulf %1, %22 : vector<1x8xf32>
    %24 = vector.broadcast %7 : f32 to vector<1x8xf32>
    %25 = arith.mulf %3, %24 : vector<1x8xf32>
    %26 = arith.addf %23, %25 : vector<1x8xf32>
    %27 = vector.broadcast %9 : f32 to vector<1x8xf32>
    %28 = arith.addf %26, %27 : vector<1x8xf32>
    %cst_6 = arith.constant 0.000000e+00 : f32
    %29 = vector.broadcast %cst_6 : f32 to vector<1x8xf32>
    %30 = arith.maximumf %28, %29 : vector<1x8xf32>
    %31 = vector.broadcast %10 : f32 to vector<1x8xf32>
    %32 = arith.mulf %21, %31 : vector<1x8xf32>
    %33 = vector.broadcast %11 : f32 to vector<1x8xf32>
    %34 = arith.mulf %30, %33 : vector<1x8xf32>
    %35 = arith.addf %32, %34 : vector<1x8xf32>
    %36 = vector.broadcast %12 : f32 to vector<1x8xf32>
    %37 = arith.addf %35, %36 : vector<1x8xf32>
    %c0_7 = arith.constant 0 : index
    %c0_8 = arith.constant 0 : index
    %38 = vector.load %arg3[%c0_7, %c0_8] : memref<1x8xf32, #tpu.memory_space<vmem>>, vector<1x8xf32>
    tpu.vector_store %arg3[%c0_7, %c0_8], %37 {strides = array<i32>} : memref<1x8xf32, #tpu.memory_space<vmem>>, vector<1x8xf32>,
    return
  }
  func.func @transform_0(%arg0: i32) -> i32 {
    %c0_i32 = arith.constant 0 : i32
    %c0_i32_0 = arith.constant 0 : i32
    return %c0_i32 : i32
  }
  func.func @transform_1(%arg0: i32) -> (i32, i32, i32) {
    %c0_i32 = arith.constant 0 : i32
    %c0_i32_0 = arith.constant 0 : i32
    %c0_i32_1 = arith.constant 0 : i32
    return %c0_i32, %arg0, %c0_i32_0 : i32, i32, i32
  }
  func.func @transform_2(%arg0: i32) -> (i32, i32) {
    %c0_i32 = arith.constant 0 : i32
    %c0_i32_0 = arith.constant 0 : i32
    return %arg0, %c0_i32 : i32, i32
  }
}

</mosaic_0001>

<llo_original>
// kernel: tpu_custom_call.1
$region0: #{tpu_custom_call.1}
  #allocation0 [shape = 'u32[]', space=smem, size = 0x4, offset = 0x4, fixed_abs, tag = 'smem constant byte address 0x4 - core index']
  #allocation1 [shape = 'u32[144,128]{1,0:T(1,128)}', space=vmem, size = 0x12000, scoped, tag = 'internal scratch']
  %s0 = inlined_call_operand.hbm [shape: f32[9], index: 0, kind: input, shape index: {}]
  %s1 = inlined_call_operand.vmem [shape: f32[2,1,8], index: 1, kind: input, shape index: {}]
  %s2 = inlined_call_operand.hbm [shape: f32[1,8], index: 2, kind: output, shape index: {}]
  %s3 = sld [smem:[#allocation0]]
  $region22: #{tpu_custom_call.1} parent=0
    _
  %s5 = ssub.s32 1, %s3
  %s6 = scalar_select 0, %s5, %s3
  $region1: #{tpu_custom_call.1} parent=0
    #allocation2 [shape = 'u8[512]{0}', space=smem, size = 0x200, scoped, tag = 'input window, operand 0, single buffered']
    #allocation3 [shape = 's32[1]{0}', space=sflag, size = 0x4, scoped, tag = 'scoped memory for tpu_custom_call.1']
    #allocation4 [shape = 's32[1]{0}', space=sflag, size = 0x4, scoped, tag = 'scoped memory for tpu_custom_call.1']
    #allocation5 [shape = 'u8[512]{0}', space=vmem, size = 0x400, scoped, tag = 'output window, operand 0, single buffered']
    %7 = vsyncpa [#allocation4], 0
    %8 = vsyncpa [#allocation3], 0
    // Predicated region
    $region2: #{tpu_custom_call.1} parent=1 // pred_check
      _
    $region3: #{tpu_custom_call.1} parent=1 // pred_check_branch
      %10 = sbr.rel (0) target = $region5
    $region4: #{tpu_custom_call.1} parent=1 // pred_region
      %s12 = ssub.s32 16, 16
      %13 = vsyncadd [#allocation4], %s12
      %16 = dma.hbm_to_smem %s0, 16, [#allocation2], [#allocation4]
    $region5: #{tpu_custom_call.1} parent=1 // pred_fallthru
      _
    // Predicated region
    $region6: #{tpu_custom_call.1} parent=1 // pred_check
      _
    $region7: #{tpu_custom_call.1} parent=1 // pred_check_branch
      %18 = sbr.rel (0) target = $region9
    $region8: #{tpu_custom_call.1} parent=1 // pred_region
      _
    $region9: #{tpu_custom_call.1} parent=1 // pred_fallthru
      _
    // Predicated region
    $region10: #{tpu_custom_call.1} parent=1 // pred_check
      _
    $region11: #{tpu_custom_call.1} parent=1 // pred_check_branch
      %20 = sbr.rel (0) target = $region13
    $region12: #{tpu_custom_call.1} parent=1 // pred_region
      %21 = dma.done [#allocation4], 16
    $region13: #{tpu_custom_call.1} parent=1 // pred_fallthru
      _
    %22 = sfence
    %v23 = vld [vmem:[%s1] sm:$0x1]
    %s24 = scalar_lea.vmem %s1, 1
    %v25 = vld [vmem:[%s24] sm:$0x1]
    %s26 = sld [smem:[#allocation2]]
    %s27 = sld [smem:[#allocation2 + $0x1]]
    %s28 = sld [smem:[#allocation2 + $0x2]]
    %s29 = sld [smem:[#allocation2 + $0x3]]
    %s30 = sld [smem:[#allocation2 + $0x4]]
    %s31 = sld [smem:[#allocation2 + $0x5]]
    %s32 = sld [smem:[#allocation2 + $0x6]]
    %s33 = sld [smem:[#allocation2 + $0x7]]
    %s34 = sld [smem:[#allocation2 + $0x8]]
    %v35 = vstv %s26
    %v36 = vmul.f32 %v23, %v35
    %v37 = vstv %s27
    %v38 = vmul.f32 %v25, %v37
    %v39 = vadd.f32 %v36, %v38
    %v40 = vstv %s30
    %v41 = vadd.f32 %v39, %v40
    %v42 = vmax.f32 %v41, 0.0
    %v43 = vstv %s28
    %v44 = vmul.f32 %v23, %v43
    %v45 = vstv %s29
    %v46 = vmul.f32 %v25, %v45
    %v47 = vadd.f32 %v44, %v46
    %v48 = vstv %s31
    %v49 = vadd.f32 %v47, %v48
    %v50 = vmax.f32 %v49, 0.0
    %v51 = vstv %s32
    %v52 = vmul.f32 %v42, %v51
    %v53 = vstv %s33
    %v54 = vmul.f32 %v50, %v53
    %v55 = vadd.f32 %v52, %v54
    %v56 = vstv %s34
    %v57 = vadd.f32 %v55, %v56
    %vm58 = vcmask 57344
    %59 = vst.msk [vmem:[#allocation5] sm:$0x1] %vm58, %v57
    // Predicated region
    $region14: #{tpu_custom_call.1} parent=1 // pred_check
      _
    $region15: #{tpu_custom_call.1} parent=1 // pred_check_branch
      %61 = sbr.rel (0) target = $region17
    $region16: #{tpu_custom_call.1} parent=1 // pred_region
      %s63 = ssub.s32 16, 16
      %64 = vsyncadd [#allocation3], %s63
      %s66 = sshll.u32 [#allocation5], 4
      %s67 = int_to_ptr.vmem [resolvable:$true] %s66
      %69 = dma.vmem_to_hbm [thread:$0]  %s67, 16, %s2, [#allocation3]
    $region17: #{tpu_custom_call.1} parent=1 // pred_fallthru
      _
    // Predicated region
    $region18: #{tpu_custom_call.1} parent=1 // pred_check
      _
    $region19: #{tpu_custom_call.1} parent=1 // pred_check_branch
      %71 = sbr.rel (0) target = $region21
    $region20: #{tpu_custom_call.1} parent=1 // pred_region
      %72 = dma.done [#allocation3], 16
    $region21: #{tpu_custom_call.1} parent=1 // pred_fallthru
      _
    %73 = vsyncpa [#allocation3], 1
    %74 = vsyncpa [#allocation4], 1

</llo_original>
